<compile_context>
chip_gen: v7x
topology: tpu7x:2x2x1
jax: 0.10.0
libtpu: 0.0.40
codegen_flags: <defaults>
</compile_context>

<pallas_src>
import math
import functools

import jax
import jax.numpy as jnp
from jax import lax
from jax.experimental import pallas as pl
from jax.experimental.pallas import tpu as pltpu


def _l2norm_linear_kernel(x_ref, w_ref, o_ref, inv_norm_ref):
    # x_ref        : (TM, K)  input rows (native dtype)
    # w_ref        : (TN, K)  raw weight rows (output units), native dtype
    # o_ref        : (TM, TN) logits tile
    # inv_norm_ref : (1, TN)  f32 scratch; persists across the inner batch sweep

    # Recompute the per-output-unit inverse L2 norm only when a new weight
    # tile becomes resident (first batch step for this output tile).
    @pl.when(pl.program_id(1) == 0)
    def _():
        wf = w_ref[...].astype(jnp.float32)                        # (TN, K)
        ones = jnp.ones((1, wf.shape[1]), jnp.float32)
        # sum_k w[n,k]^2, produced directly in (1, TN) lane-major layout.
        sq = lax.dot_general(ones, wf * wf, (((1,), (1,)), ((), ())),
                             preferred_element_type=jnp.float32)   # (1, TN)
        # 1 / max(||w_n||, 1e-12)  ==  min(rsqrt(||w_n||^2), 1e12)
        inv_norm_ref[...] = jnp.minimum(lax.rsqrt(sq), 1e12)

    # Raw matmul on the MXU: contract over K of x (TM, K) and w (TN, K),
    # f32 accumulation; scale the small output tile instead of the weight.
    out = lax.dot_general(x_ref[...], w_ref[...], (((1,), (1,)), ((), ())),
                          preferred_element_type=jnp.float32)      # (TM, TN)
    o_ref[...] = (out * inv_norm_ref[...]).astype(o_ref.dtype)


def _round_up(a, b):
    return (a + b - 1) // b * b


def _vmem_limit_bytes():
    # 75% of the physical per-core VMEM: leaves headroom for pipeline buffers
    # and compiler scratch (v7x has 64 MiB/TC; v5e/v6e have 128 MiB).
    try:
        return int(pltpu.get_tpu_info().vmem_capacity_bytes) * 3 // 4
    except Exception:
        return None


@functools.partial(jax.jit, static_argnames=("tm", "tn"))
def l2_normalized_linear(x, weight, *, tm=128, tn=256):
    """x: (B, K), weight: (N, K)  ->  (B, N) == x @ normalize(weight, dim=1).T"""
    B, K = x.shape
    N, K2 = weight.shape
    assert K == K2, "input_dim mismatch between x and weight"

    # --- output-unit (lane) tiling --------------------------------------
    n_pad = _round_up(N, 128)
    tn_eff = 128
    for cand in range(128, min(tn, n_pad) + 1, 128):
        if n_pad % cand == 0:
            tn_eff = cand
    w = weight
    if n_pad != N:
        # Padded rows are all-zero -> zero norm -> inv_norm saturates at 1e12
        # and the corresponding logits are exactly 0; sliced off below.
        w = jnp.pad(weight, ((0, n_pad - N), (0, 0)))

    # --- batch (sublane) tiling ------------------------------------------
    sub = 8 if x.dtype.itemsize >= 4 else 32 // x.dtype.itemsize
    tm_eff = min(_round_up(tm, sub), _round_up(B, sub))
    b_pad = _round_up(B, tm_eff)
    if b_pad != B:
        x = jnp.pad(x, ((0, b_pad - B), (0, 0)))

    grid = (n_pad // tn_eff, b_pad // tm_eff)   # weight tiles outer, batch inner

    compiler_kwargs = dict(dimension_semantics=("parallel", "arbitrary"))
    vmem_limit = _vmem_limit_bytes()
    if vmem_limit is not None:
        compiler_kwargs["vmem_limit_bytes"] = vmem_limit

    out = pl.pallas_call(
        _l2norm_linear_kernel,
        out_shape=jax.ShapeDtypeStruct((b_pad, n_pad), x.dtype),
        grid_spec=pltpu.PrefetchScalarGridSpec(
            num_scalar_prefetch=0,
            grid=grid,
            in_specs=[
                # x tile: re-streamed per weight tile (tiny).
                pl.BlockSpec((tm_eff, K), lambda j, i: (i, 0)),
                # weight tile: constant over the inner batch axis -> each block
                # is DMA'd from HBM exactly once per call.
                pl.BlockSpec((tn_eff, K), lambda j, i: (j, 0)),
            ],
            out_specs=pl.BlockSpec((tm_eff, tn_eff), lambda j, i: (i, j)),
            scratch_shapes=[pltpu.VMEM((1, tn_eff), jnp.float32)],
        ),
        compiler_params=pltpu.CompilerParams(**compiler_kwargs),
    )(x, w)

    return out[:B, :N]


if __name__ == "__main__":
    # Small shapes consistent with the module: batch=8, input_dim=32, output_dim=256.
    batch, input_dim, output_dim = 8, 32, 256

    key = jax.random.PRNGKey(0)
    kx, kw = jax.random.split(key)

    # Deterministic init matching nn.Parameter.uniform_(-stdv, stdv), stdv = 1/sqrt(input_dim).
    stdv = 1.0 / math.sqrt(input_dim)
    weight = jax.random.uniform(
        kw, (output_dim, input_dim), dtype=jnp.float32, minval=-stdv, maxval=stdv
    )
    x = jax.random.normal(kx, (batch, input_dim), dtype=jnp.float32)

    out = jax.block_until_ready(l2_normalized_linear(x, weight))

    # Pure-JAX reference of the PyTorch semantics.
    norms = jnp.sqrt(jnp.sum(weight * weight, axis=1, keepdims=True))
    w_norm = weight / jnp.maximum(norms, 1e-12)
    ref = x @ w_norm.T

    assert out.shape == (batch, output_dim)
    assert jnp.allclose(out, ref, atol=1e-4, rtol=1e-5), float(jnp.max(jnp.abs(out - ref)))

    print("KERNEL_OK")
</pallas_src>

<mosaic_0001>
module attributes {stable_mosaic.version = 11 : i64} {
  func.func @_l2norm_linear_kernel(%arg0: i32, %arg1: i32, %arg2: memref<8x32xf32, #tpu.memory_space<vmem>>, %arg3: memref<256x32xf32, #tpu.memory_space<vmem>>, %arg4: memref<8x256xf32, #tpu.memory_space<vmem>>, %arg5: memref<1x256xf32, #tpu.memory_space<vmem>>) attributes {dimension_semantics = [#tpu.dimension_semantics<parallel>, #tpu.dimension_semantics<arbitrary>], iteration_bounds = array<i64: 1, 1>, scalar_prefetch = 0 : i64, scratch_operands = 1 : i64, tpu.core_type = #tpu.core_type<tc>, window_params = [{transform_indices = @transform_0, window_bounds = array<i64: 8, 32>}, {transform_indices = @transform_1, window_bounds = array<i64: 256, 32>}, {transform_indices = @transform_2, window_bounds = array<i64: 8, 256>}]} {
    %c0_i32 = arith.constant 0 : i32
    %0 = arith.cmpi eq, %arg1, %c0_i32 : i32
    %1 = arith.extui %0 : i1 to i32
    %c0_i32_0 = arith.constant 0 : i32
    %2 = arith.cmpi ne, %1, %c0_i32_0 : i32
    scf.if %2 {
      %c0_8 = arith.constant 0 : index
      %c0_9 = arith.constant 0 : index
      %10 = vector.load %arg3[%c0_8, %c0_9] : memref<256x32xf32, #tpu.memory_space<vmem>>, vector<256x32xf32>
      %cst_10 = arith.constant 1.000000e+00 : f32
      %11 = vector.broadcast %cst_10 : f32 to vector<1x32xf32>
      %12 = arith.mulf %10, %10 : vector<256x32xf32>
      %cst_11 = arith.constant dense<0.000000e+00> : vector<1x256xf32>
      %13 = tpu.matmul %11, %12, %cst_11 {dimension_numbers = #tpu.dot_dimension_numbers<[1], [1], [0], [0], [0, 0, 1, 0], [], []>} : vector<1x32xf32>, vector<256x32xf32>, vector<1x256xf32> -> vector<1x256xf32>
      %14 = math.rsqrt %13 : vector<1x256xf32>
      %cst_12 = arith.constant 9.99999995E+11 : f32
      %15 = vector.broadcast %cst_12 : f32 to vector<1x256xf32>
      %16 = arith.minimumf %14, %15 : vector<1x256xf32>
      %c0_13 = arith.constant 0 : index
      %c0_14 = arith.constant 0 : index
      %17 = vector.load %arg5[%c0_13, %c0_14] : memref<1x256xf32, #tpu.memory_space<vmem>>, vector<1x256xf32>
      tpu.vector_store %arg5[%c0_13, %c0_14], %16 {strides = array<i32>} : memref<1x256xf32, #tpu.memory_space<vmem>>, vector<1x256xf32>,
    } else {
    }
    %c0 = arith.constant 0 : index
    %c0_1 = arith.constant 0 : index
    %3 = vector.load %arg2[%c0, %c0_1] : memref<8x32xf32, #tpu.memory_space<vmem>>, vector<8x32xf32>
    %c0_2 = arith.constant 0 : index
    %c0_3 = arith.constant 0 : index
    %4 = vector.load %arg3[%c0_2, %c0_3] : memref<256x32xf32, #tpu.memory_space<vmem>>, vector<256x32xf32>
    %cst = arith.constant dense<0.000000e+00> : vector<8x256xf32>
    %5 = tpu.matmul %3, %4, %cst {dimension_numbers = #tpu.dot_dimension_numbers<[1], [1], [0], [0], [0, 0, 1, 0], [], []>} : vector<8x32xf32>, vector<256x32xf32>, vector<8x256xf32> -> vector<8x256xf32>
    %c0_4 = arith.constant 0 : index
    %c0_5 = arith.constant 0 : index
    %6 = vector.load %arg5[%c0_4, %c0_5] : memref<1x256xf32, #tpu.memory_space<vmem>>, vector<1x256xf32>
    %7 = vector.broadcast %6 : vector<1x256xf32> to vector<8x256xf32>
    %8 = arith.mulf %5, %7 : vector<8x256xf32>
    %c0_6 = arith.constant 0 : index
    %c0_7 = arith.constant 0 : index
    %9 = vector.load %arg4[%c0_6, %c0_7] : memref<8x256xf32, #tpu.memory_space<vmem>>, vector<8x256xf32>
    tpu.vector_store %arg4[%c0_6, %c0_7], %8 {strides = array<i32>} : memref<8x256xf32, #tpu.memory_space<vmem>>, vector<8x256xf32>,
    return
  }
  func.func @transform_0(%arg0: i32, %arg1: i32) -> (i32, i32) {
    %c0_i32 = arith.constant 0 : i32
    %c0_i32_0 = arith.constant 0 : i32
    return %arg1, %c0_i32 : i32, i32
  }
  func.func @transform_1(%arg0: i32, %arg1: i32) -> (i32, i32) {
    %c0_i32 = arith.constant 0 : i32
    %c0_i32_0 = arith.constant 0 : i32
    return %arg0, %c0_i32 : i32, i32
  }
  func.func @transform_2(%arg0: i32, %arg1: i32) -> (i32, i32) {
    %c0_i32 = arith.constant 0 : i32
    return %arg1, %arg0 : i32, i32
  }
}

</mosaic_0001>

<llo_original>
// kernel: l2_normalized_linear.1
$region0: #{l2_normalized_linear.1}
  #allocation0 [shape = 'u32[]', space=smem, size = 0x4, offset = 0x4, fixed_abs, tag = 'smem constant byte address 0x4 - core index']
  #allocation1 [shape = 'u32[144,128]{1,0:T(1,128)}', space=vmem, size = 0x12000, scoped, tag = 'internal scratch']
  #allocation2 [shape = 'f32[1,256]{1,0:T(1,128)}', space=vmem, size = 0x400, scoped, tag = 'scratch operand']
  %s0 = inlined_call_operand.vmem [shape: f32[8,32], index: 0, kind: input, shape index: {}]
  %s1 = inlined_call_operand.vmem [shape: f32[256,32], index: 1, kind: input, shape index: {}]
  %s2 = inlined_call_operand.hbm [shape: f32[8,256], index: 2, kind: output, shape index: {}]
  %s3 = sld [smem:[#allocation0]]
  $region22: #{l2_normalized_linear.1} parent=0
    _
  %s5 = ssub.s32 1, %s3
  %s6 = scalar_select 0, %s5, %s3
  $region1: #{l2_normalized_linear.1} parent=0
    #allocation3 [shape = 'u8[8192]{0}', space=vmem, size = 0x2000, scoped, tag = 'output window, operand 0, single buffered']
    #allocation4 [shape = 's32[1]{0}', space=sflag, size = 0x4, scoped, tag = 'scoped memory for l2_normalized_linear.1']
    %7 = vsyncpa [#allocation4], 0
    // Predicated region
    $region2: #{l2_normalized_linear.1} parent=1 // pred_check
      _
    $region3: #{l2_normalized_linear.1} parent=1 // pred_check_branch
      %9 = sbr.rel (0) target = $region5
    $region4: #{l2_normalized_linear.1} parent=1 // pred_region
      _
    $region5: #{l2_normalized_linear.1} parent=1 // pred_fallthru
      _
    // Predicated region
    $region6: #{l2_normalized_linear.1} parent=1 // pred_check
      _
    $region7: #{l2_normalized_linear.1} parent=1 // pred_check_branch
      %11 = sbr.rel (0) target = $region9
    $region8: #{l2_normalized_linear.1} parent=1 // pred_region
      _
    $region9: #{l2_normalized_linear.1} parent=1 // pred_fallthru
      _
    %p12 = scmp.eq.s32.totalorder 0, 0
    // Predicated region
    $region10: #{l2_normalized_linear.1} parent=1 // pred_check
      %p13 = pneg %p12
    $region11: #{l2_normalized_linear.1} parent=1 // pred_check_branch
      %15 = sbr.rel (%p13) target = $region13
    $region12: #{l2_normalized_linear.1} parent=1 // pred_region
      %v16 = vld [vmem:[%s1] sm:$0xff]
      %v17 = vld [vmem:[%s1 + $0x8] sm:$0xff]
      %v18 = vld [vmem:[%s1 + $0x10] sm:$0xff]
      %v19 = vld [vmem:[%s1 + $0x18] sm:$0xff]
      %v20 = vld [vmem:[%s1 + $0x20] sm:$0xff]
      %v21 = vld [vmem:[%s1 + $0x28] sm:$0xff]
      %v22 = vld [vmem:[%s1 + $0x30] sm:$0xff]
      %v23 = vld [vmem:[%s1 + $0x38] sm:$0xff]
      %v24 = vld [vmem:[%s1 + $0x40] sm:$0xff]
      %v25 = vld [vmem:[%s1 + $0x48] sm:$0xff]
      %v26 = vld [vmem:[%s1 + $0x50] sm:$0xff]
      %v27 = vld [vmem:[%s1 + $0x58] sm:$0xff]
      %v28 = vld [vmem:[%s1 + $0x60] sm:$0xff]
      %v29 = vld [vmem:[%s1 + $0x68] sm:$0xff]
      %v30 = vld [vmem:[%s1 + $0x70] sm:$0xff]
      %v31 = vld [vmem:[%s1 + $0x78] sm:$0xff]
      %v32 = vld [vmem:[%s1 + $0x80] sm:$0xff]
      %v33 = vld [vmem:[%s1 + $0x88] sm:$0xff]
      %v34 = vld [vmem:[%s1 + $0x90] sm:$0xff]
      %v35 = vld [vmem:[%s1 + $0x98] sm:$0xff]
      %v36 = vld [vmem:[%s1 + $0xa0] sm:$0xff]
      %v37 = vld [vmem:[%s1 + $0xa8] sm:$0xff]
      %v38 = vld [vmem:[%s1 + $0xb0] sm:$0xff]
      %v39 = vld [vmem:[%s1 + $0xb8] sm:$0xff]
      %v40 = vld [vmem:[%s1 + $0xc0] sm:$0xff]
      %v41 = vld [vmem:[%s1 + $0xc8] sm:$0xff]
      %v42 = vld [vmem:[%s1 + $0xd0] sm:$0xff]
      %v43 = vld [vmem:[%s1 + $0xd8] sm:$0xff]
      %v44 = vld [vmem:[%s1 + $0xe0] sm:$0xff]
      %v45 = vld [vmem:[%s1 + $0xe8] sm:$0xff]
      %v46 = vld [vmem:[%s1 + $0xf0] sm:$0xff]
      %v47 = vld [vmem:[%s1 + $0xf8] sm:$0xff]
      %v48 = vmul.f32 %v16, %v16
      %v49 = vmul.f32 %v17, %v17
      %v50 = vmul.f32 %v18, %v18
      %v51 = vmul.f32 %v19, %v19
      %v52 = vmul.f32 %v20, %v20
      %v53 = vmul.f32 %v21, %v21
      %v54 = vmul.f32 %v22, %v22
      %v55 = vmul.f32 %v23, %v23
      %v56 = vmul.f32 %v24, %v24
      %v57 = vmul.f32 %v25, %v25
      %v58 = vmul.f32 %v26, %v26
      %v59 = vmul.f32 %v27, %v27
      %v60 = vmul.f32 %v28, %v28
      %v61 = vmul.f32 %v29, %v29
      %v62 = vmul.f32 %v30, %v30
      %v63 = vmul.f32 %v31, %v31
      %v64 = vmul.f32 %v32, %v32
      %v65 = vmul.f32 %v33, %v33
      %v66 = vmul.f32 %v34, %v34
      %v67 = vmul.f32 %v35, %v35
      %v68 = vmul.f32 %v36, %v36
      %v69 = vmul.f32 %v37, %v37
      %v70 = vmul.f32 %v38, %v38
      %v71 = vmul.f32 %v39, %v39
      %v72 = vmul.f32 %v40, %v40
      %v73 = vmul.f32 %v41, %v41
      %v74 = vmul.f32 %v42, %v42
      %v75 = vmul.f32 %v43, %v43
      %v76 = vmul.f32 %v44, %v44
      %v77 = vmul.f32 %v45, %v45
      %v78 = vmul.f32 %v46, %v46
      %v79 = vmul.f32 %v47, %v47
      %vm80 = vcmask 261120
      %v82 = vsel %vm80, 1.0, 0
      %v85 = vsel %vm80, %v48, 0
      %v88 = vsel %vm80, %v49, 0
      %v91 = vsel %vm80, %v50, 0
      %v94 = vsel %vm80, %v51, 0
      %v97 = vsel %vm80, %v52, 0
      %v100 = vsel %vm80, %v53, 0
      %v103 = vsel %vm80, %v54, 0
      %v106 = vsel %vm80, %v55, 0
      %v109 = vsel %vm80, %v56, 0
      %v112 = vsel %vm80, %v57, 0
      %v115 = vsel %vm80, %v58, 0
      %v118 = vsel %vm80, %v59, 0
      %v121 = vsel %vm80, %v60, 0
      %v124 = vsel %vm80, %v61, 0
      %v127 = vsel %vm80, %v62, 0
      %v130 = vsel %vm80, %v63, 0
      %v133 = vsel %vm80, %v64, 0
      %v136 = vsel %vm80, %v65, 0
      %v139 = vsel %vm80, %v66, 0
      %v142 = vsel %vm80, %v67, 0
      %v145 = vsel %vm80, %v68, 0
      %v148 = vsel %vm80, %v69, 0
      %v151 = vsel %vm80, %v70, 0
      %v154 = vsel %vm80, %v71, 0
      %v157 = vsel %vm80, %v72, 0
      %v160 = vsel %vm80, %v73, 0
      %v163 = vsel %vm80, %v74, 0
      %v166 = vsel %vm80, %v75, 0
      %v169 = vsel %vm80, %v76, 0
      %v172 = vsel %vm80, %v77, 0
      %v175 = vsel %vm80, %v78, 0
      %v178 = vsel %vm80, %v79, 0
      %180 = vmatprep.subr.mxu0 0.0
      %181 = vmatpush1.xpose.msra.mxu0 %v85
      %182 = vmatprep.subr.mxu0 0.0
      %183 = vmatpush1.xpose.msra.mxu0 %v88
      %184 = vmatprep.subr.mxu0 0.0
      %185 = vmatpush1.xpose.msra.mxu0 %v91
      %186 = vmatprep.subr.mxu0 0.0
      %187 = vmatpush1.xpose.msra.mxu0 %v94
      %188 = vmatprep.subr.mxu0 0.0
      %189 = vmatpush1.xpose.msra.mxu0 %v97
      %190 = vmatprep.subr.mxu0 0.0
      %191 = vmatpush1.xpose.msra.mxu0 %v100
      %192 = vmatprep.subr.mxu0 0.0
      %193 = vmatpush1.xpose.msra.mxu0 %v103
      %194 = vmatprep.subr.mxu0 0.0
      %195 = vmatpush1.xpose.msra.mxu0 %v106
      %196 = vmatprep.subr.mxu0 0.0
      %197 = vmatpush1.xpose.msra.mxu0 %v109
      %198 = vmatprep.subr.mxu0 0.0
      %199 = vmatpush1.xpose.msra.mxu0 %v112
      %200 = vmatprep.subr.mxu0 0.0
      %201 = vmatpush1.xpose.msra.mxu0 %v115
      %202 = vmatprep.subr.mxu0 0.0
      %203 = vmatpush1.xpose.msra.mxu0 %v118
      %204 = vmatprep.subr.mxu0 0.0
      %205 = vmatpush1.xpose.msra.mxu0 %v121
      %206 = vmatprep.subr.mxu0 0.0
      %207 = vmatpush1.xpose.msra.mxu0 %v124
      %208 = vmatprep.subr.mxu0 0.0
      %209 = vmatpush1.xpose.msra.mxu0 %v127
      %210 = vmatprep.subr.mxu0 0.0
      %211 = vmatpush1.xpose.msra.mxu0 %v130
      %212 = vmatprep.subr.mxu0 0.0
      %213 = vmatpush1.xpose.msra.mxu0 %v133
      %214 = vmatprep.subr.mxu0 0.0
      %215 = vmatpush1.xpose.msra.mxu0 %v136
      %216 = vmatprep.subr.mxu0 0.0
      %217 = vmatpush1.xpose.msra.mxu0 %v139
      %218 = vmatprep.subr.mxu0 0.0
      %219 = vmatpush1.xpose.msra.mxu0 %v142
      %220 = vmatprep.subr.mxu0 0.0
      %221 = vmatpush1.xpose.msra.mxu0 %v145
      %222 = vmatprep.subr.mxu0 0.0
      %223 = vmatpush1.xpose.msra.mxu0 %v148
      %224 = vmatprep.subr.mxu0 0.0
      %225 = vmatpush1.xpose.msra.mxu0 %v151
      %226 = vmatprep.subr.mxu0 0.0
      %227 = vmatpush1.xpose.msra.mxu0 %v154
      %228 = vmatprep.subr.mxu0 0.0
      %229 = vmatpush1.xpose.msra.mxu0 %v157
      %230 = vmatprep.subr.mxu0 0.0
      %231 = vmatpush1.xpose.msra.mxu0 %v160
      %232 = vmatprep.subr.mxu0 0.0
      %233 = vmatpush1.xpose.msra.mxu0 %v163
      %234 = vmatprep.subr.mxu0 0.0
      %235 = vmatpush1.xpose.msra.mxu0 %v166
      %236 = vmatprep.subr.mxu0 0.0
      %237 = vmatpush1.xpose.msra.mxu0 %v169
      %238 = vmatprep.subr.mxu0 0.0
      %239 = vmatpush1.xpose.msra.mxu0 %v172
      %240 = vmatprep.subr.mxu0 0.0
      %241 = vmatpush1.xpose.msra.mxu0 %v175
      %242 = vmatprep.subr.mxu0 0.0
      %243 = vmatpush1.xpose.msra.mxu0 %v178
      %244 = vmatprep.mubr.f32.mxu0 0.0
      %245 = vmatmul.mubr.f32.gmra.mrb[0].mxu0 %v82
      %v246 = vpop.f32.mrb[0].mxu0
      %v247 = vadd.f32 0.0, %v246
      %v248 = vpop.f32.mrb[0].mxu0
      %v249 = vadd.f32 0.0, %v248
      %250 = vdwg.mxu0
      %v251 = vrsqrt.pop %v247
      %v252 = vrsqrt.pop %v249
      %v253 = vmin.f32 %v251, 1e+12
      %v254 = vmin.f32 %v252, 1e+12
      %v257 = vcombine.low %v253, %v254
      %v259 = vunpack.c.l.s4 1966171168
      %v260 = vunpack.c.0.s8 %v259
      %v261 = vlaneseq
      %v262 = vshrl.u32 %v261, 7
      %v263 = vsub.s32 %v260, %v262
      %v264 = vrot.slane %v257, %v263
      %v266 = vunpack.c.l.s4 1966171168
      %v267 = vunpack.c.0.s8 %v266
      %v268 = vlaneseq
      %v269 = vshrl.u32 %v268, 7
      %v270 = vsub.s32 %v267, %v269
      %v271 = vrot.slane %v264, %v270
      %v273 = vlaneseq
      %vm274 = vcmp.ge.s32.totalorder %v273, 0
      %vm275 = vcmp.lt.s32.totalorder %v273, 256
      %vm276 = vmand %vm274, %vm275
      %277 = vst.msk [vmem:[#allocation2] sm:$0x3] %vm276, %v271
    $region13: #{l2_normalized_linear.1} parent=1 // pred_fallthru
      _
    %v278 = vld [vmem:[%s0] sm:$0xff]
    %v279 = vld [vmem:[%s1] sm:$0xff]
    %v280 = vld [vmem:[%s1 + $0x8] sm:$0xff]
    %v281 = vld [vmem:[%s1 + $0x10] sm:$0xff]
    %v282 = vld [vmem:[%s1 + $0x18] sm:$0xff]
    %v283 = vld [vmem:[%s1 + $0x20] sm:$0xff]
    %v284 = vld [vmem:[%s1 + $0x28] sm:$0xff]
    %v285 = vld [vmem:[%s1 + $0x30] sm:$0xff]
    %v286 = vld [vmem:[%s1 + $0x38] sm:$0xff]
    %v287 = vld [vmem:[%s1 + $0x40] sm:$0xff]
    %v288 = vld [vmem:[%s1 + $0x48] sm:$0xff]
    %v289 = vld [vmem:[%s1 + $0x50] sm:$0xff]
    %v290 = vld [vmem:[%s1 + $0x58] sm:$0xff]
    %v291 = vld [vmem:[%s1 + $0x60] sm:$0xff]
    %v292 = vld [vmem:[%s1 + $0x68] sm:$0xff]
    %v293 = vld [vmem:[%s1 + $0x70] sm:$0xff]
    %v294 = vld [vmem:[%s1 + $0x78] sm:$0xff]
    %v295 = vld [vmem:[%s1 + $0x80] sm:$0xff]
    %v296 = vld [vmem:[%s1 + $0x88] sm:$0xff]
    %v297 = vld [vmem:[%s1 + $0x90] sm:$0xff]
    %v298 = vld [vmem:[%s1 + $0x98] sm:$0xff]
    %v299 = vld [vmem:[%s1 + $0xa0] sm:$0xff]
    %v300 = vld [vmem:[%s1 + $0xa8] sm:$0xff]
    %v301 = vld [vmem:[%s1 + $0xb0] sm:$0xff]
    %v302 = vld [vmem:[%s1 + $0xb8] sm:$0xff]
    %v303 = vld [vmem:[%s1 + $0xc0] sm:$0xff]
    %v304 = vld [vmem:[%s1 + $0xc8] sm:$0xff]
    %v305 = vld [vmem:[%s1 + $0xd0] sm:$0xff]
    %v306 = vld [vmem:[%s1 + $0xd8] sm:$0xff]
    %v307 = vld [vmem:[%s1 + $0xe0] sm:$0xff]
    %v308 = vld [vmem:[%s1 + $0xe8] sm:$0xff]
    %v309 = vld [vmem:[%s1 + $0xf0] sm:$0xff]
    %v310 = vld [vmem:[%s1 + $0xf8] sm:$0xff]
    %vm311 = vcmask 261120
    %v313 = vsel %vm311, %v278, 0
    %v316 = vsel %vm311, %v279, 0
    %v319 = vsel %vm311, %v280, 0
    %v322 = vsel %vm311, %v281, 0
    %v325 = vsel %vm311, %v282, 0
    %v328 = vsel %vm311, %v283, 0
    %v331 = vsel %vm311, %v284, 0
    %v334 = vsel %vm311, %v285, 0
    %v337 = vsel %vm311, %v286, 0
    %v340 = vsel %vm311, %v287, 0
    %v343 = vsel %vm311, %v288, 0
    %v346 = vsel %vm311, %v289, 0
    %v349 = vsel %vm311, %v290, 0
    %v352 = vsel %vm311, %v291, 0
    %v355 = vsel %vm311, %v292, 0
    %v358 = vsel %vm311, %v293, 0
    %v361 = vsel %vm311, %v294, 0
    %v364 = vsel %vm311, %v295, 0
    %v367 = vsel %vm311, %v296, 0
    %v370 = vsel %vm311, %v297, 0
    %v373 = vsel %vm311, %v298, 0
    %v376 = vsel %vm311, %v299, 0
    %v379 = vsel %vm311, %v300, 0
    %v382 = vsel %vm311, %v301, 0
    %v385 = vsel %vm311, %v302, 0
    %v388 = vsel %vm311, %v303, 0
    %v391 = vsel %vm311, %v304, 0
    %v394 = vsel %vm311, %v305, 0
    %v397 = vsel %vm311, %v306, 0
    %v400 = vsel %vm311, %v307, 0
    %v403 = vsel %vm311, %v308, 0
    %v406 = vsel %vm311, %v309, 0
    %v409 = vsel %vm311, %v310, 0
    %411 = vmatprep.subr.mxu0 0.0
    %412 = vmatpush1.xpose.msra.mxu0 %v316
    %413 = vmatprep.subr.mxu0 0.0
    %414 = vmatpush1.xpose.msra.mxu0 %v319
    %415 = vmatprep.subr.mxu0 0.0
    %416 = vmatpush1.xpose.msra.mxu0 %v322
    %417 = vmatprep.subr.mxu0 0.0
    %418 = vmatpush1.xpose.msra.mxu0 %v325
    %419 = vmatprep.subr.mxu0 0.0
    %420 = vmatpush1.xpose.msra.mxu0 %v328
    %421 = vmatprep.subr.mxu0 0.0
    %422 = vmatpush1.xpose.msra.mxu0 %v331
    %423 = vmatprep.subr.mxu0 0.0
    %424 = vmatpush1.xpose.msra.mxu0 %v334
    %425 = vmatprep.subr.mxu0 0.0
    %426 = vmatpush1.xpose.msra.mxu0 %v337
    %427 = vmatprep.subr.mxu0 0.0
    %428 = vmatpush1.xpose.msra.mxu0 %v340
    %429 = vmatprep.subr.mxu0 0.0
    %430 = vmatpush1.xpose.msra.mxu0 %v343
    %431 = vmatprep.subr.mxu0 0.0
    %432 = vmatpush1.xpose.msra.mxu0 %v346
    %433 = vmatprep.subr.mxu0 0.0
    %434 = vmatpush1.xpose.msra.mxu0 %v349
    %435 = vmatprep.subr.mxu0 0.0
    %436 = vmatpush1.xpose.msra.mxu0 %v352
    %437 = vmatprep.subr.mxu0 0.0
    %438 = vmatpush1.xpose.msra.mxu0 %v355
    %439 = vmatprep.subr.mxu0 0.0
    %440 = vmatpush1.xpose.msra.mxu0 %v358
    %441 = vmatprep.subr.mxu0 0.0
    %442 = vmatpush1.xpose.msra.mxu0 %v361
    %443 = vmatprep.subr.mxu0 0.0
    %444 = vmatpush1.xpose.msra.mxu0 %v364
    %445 = vmatprep.subr.mxu0 0.0
    %446 = vmatpush1.xpose.msra.mxu0 %v367
    %447 = vmatprep.subr.mxu0 0.0
    %448 = vmatpush1.xpose.msra.mxu0 %v370
    %449 = vmatprep.subr.mxu0 0.0
    %450 = vmatpush1.xpose.msra.mxu0 %v373
    %451 = vmatprep.subr.mxu0 0.0
    %452 = vmatpush1.xpose.msra.mxu0 %v376
    %453 = vmatprep.subr.mxu0 0.0
    %454 = vmatpush1.xpose.msra.mxu0 %v379
    %455 = vmatprep.subr.mxu0 0.0
    %456 = vmatpush1.xpose.msra.mxu0 %v382
    %457 = vmatprep.subr.mxu0 0.0
    %458 = vmatpush1.xpose.msra.mxu0 %v385
    %459 = vmatprep.subr.mxu0 0.0
    %460 = vmatpush1.xpose.msra.mxu0 %v388
    %461 = vmatprep.subr.mxu0 0.0
    %462 = vmatpush1.xpose.msra.mxu0 %v391
    %463 = vmatprep.subr.mxu0 0.0
    %464 = vmatpush1.xpose.msra.mxu0 %v394
    %465 = vmatprep.subr.mxu0 0.0
    %466 = vmatpush1.xpose.msra.mxu0 %v397
    %467 = vmatprep.subr.mxu0 0.0
    %468 = vmatpush1.xpose.msra.mxu0 %v400
    %469 = vmatprep.subr.mxu0 0.0
    %470 = vmatpush1.xpose.msra.mxu0 %v403
    %471 = vmatprep.subr.mxu0 0.0
    %472 = vmatpush1.xpose.msra.mxu0 %v406
    %473 = vmatprep.subr.mxu0 0.0
    %474 = vmatpush1.xpose.msra.mxu0 %v409
    %475 = vmatprep.mubr.f32.mxu0 0.0
    %476 = vmatmul.mubr.f32.gmra.mrb[0].mxu0 %v313
    %v477 = vpop.f32.mrb[0].mxu0
    %v478 = vadd.f32 0.0, %v477
    %v479 = vpop.f32.mrb[0].mxu0
    %v480 = vadd.f32 0.0, %v479
    %481 = vdwg.mxu0
    %v482 = vld [vmem:[#allocation2] sm:$0x3]
    %v484 = vlaneseq
    %v485 = vshrl.u32 %v484, 7
    %v486 = vsub.s32 0, %v485
    %v487 = vrot.slane %v482, %v486
    %v488 = vlaneseq
    %v489 = vshrl.u32 %v488, 7
    %v490 = vsub.s32 1, %v489
    %v491 = vrot.slane %v482, %v490
    %v494 = vmul.f32 %v478, %v487
    %v495 = vmul.f32 %v480, %v491
    %496 = vst [vmem:[#allocation3] sm:$0xff] %v494
    %497 = vst [vmem:[#allocation3 + $0x8] sm:$0xff] %v495
    // Predicated region
    $region14: #{l2_normalized_linear.1} parent=1 // pred_check
      _
    $region15: #{l2_normalized_linear.1} parent=1 // pred_check_branch
      %499 = sbr.rel (0) target = $region17
    $region16: #{l2_normalized_linear.1} parent=1 // pred_region
      %s501 = ssub.s32 256, 256
      %502 = vsyncadd [#allocation4], %s501
      %s504 = sshll.u32 [#allocation3], 4
      %s505 = int_to_ptr.vmem [resolvable:$true] %s504
      %507 = dma.vmem_to_hbm [thread:$0]  %s505, 256, %s2, [#allocation4]
    $region17: #{l2_normalized_linear.1} parent=1 // pred_fallthru
      _
    // Predicated region
    $region18: #{l2_normalized_linear.1} parent=1 // pred_check
      _
    $region19: #{l2_normalized_linear.1} parent=1 // pred_check_branch
      %509 = sbr.rel (0) target = $region21
    $region20: #{l2_normalized_linear.1} parent=1 // pred_region
      %510 = dma.done [#allocation4], 256
    $region21: #{l2_normalized_linear.1} parent=1 // pred_fallthru
      _
    %511 = vsyncpa [#allocation4], 1

</llo_original>
